<compile_context>
chip_gen: v6e
topology: v6e:2x2x1
jax: 0.10.0
libtpu: 0.0.40
codegen_flags: <defaults>
</compile_context>

<pallas_src>
import numpy as np
import jax
import jax.numpy as jnp
from jax.experimental import pallas as pl
from jax.experimental.pallas import tpu as pltpu


def _round_up(x, m):
    return ((x + m - 1) // m) * m


def _vmem_budget_bytes():
    """Generation-aware scoped-VMEM request (v5e/v6e ~96 MiB, v7x ~48 MiB)."""
    try:
        cap = pltpu.get_tpu_info().vmem_capacity_bytes
    except Exception:
        cap = 64 * 1024 * 1024            # conservative (v7x-sized) fallback
    return int(min(cap * 3 // 4, 96 * 1024 * 1024))


def _make_loss_kernel(C, SB, PRH, TR, R):
    """Kernel closure over static shape parameters (all Python ints)."""

    def kernel(logits_ref, labels_ref, pred_ref, tgt_ref, ce_ref, mse_ref):
        i = pl.program_id(1)                          # inner row-stream axis
        steps = pl.num_programs(1)
        blk = pl.program_id(0) * steps + i            # global row-block index

        # ---- step 0 (per core): zero CE accumulator, do this core's MSE slab ----
        @pl.when(i == 0)
        def _():
            ce_ref[...] = jnp.zeros_like(ce_ref)
            diff = (pred_ref[0].astype(jnp.float32)
                    - tgt_ref[0].astype(jnp.float32))           # (PRH, 128)
            sq = diff * diff
            part = sq[0:8, :]
            for k in range(1, PRH // 8):                        # static unroll
                part = part + sq[8 * k:8 * (k + 1), :]
            mse_ref[0] = part                                   # (8, 128)

        # ---- streamed CE over this row tile: C lane-dense (SB,128) slabs ----
        xs = [logits_ref[c].astype(jnp.float32) for c in range(C)]
        m = xs[0]
        for c in range(1, C):
            m = jnp.maximum(m, xs[c])
        s = jnp.exp(xs[0] - m)
        for c in range(1, C):
            s = s + jnp.exp(xs[c] - m)
        lse = m + jnp.log(s)                                    # (SB, 128)

        labels = labels_ref[...]                                # (SB, 128) int32
        sel = jnp.where(labels == 0, xs[0], 0.0)
        for c in range(1, C):
            sel = sel + jnp.where(labels == c, xs[c], 0.0)

        # in-kernel row-validity mask (handles ragged / padded rows)
        rid = (blk * TR
               + jax.lax.broadcasted_iota(jnp.int32, (SB, 128), 0) * 128
               + jax.lax.broadcasted_iota(jnp.int32, (SB, 128), 1))
        contrib = jnp.where(rid < R, lse - sel, 0.0)
        ce_ref[0] += contrib                                    # VPU add, no reduce

    return kernel


def loss_a_pallas(pred_matched, target_matched, logits, labels, num_bbox,
                  *, tile_rows=4096, num_splits=2):
    """logits: (R, C) native dtype; labels: (R,) int; pred/target: (N, D)."""
    R, C = logits.shape
    N, D = pred_matched.shape
    NC = num_splits
    itemsize = jnp.dtype(logits.dtype).itemsize
    granule = 1024 if itemsize >= 4 else 2048     # keeps sublane block 8/16-aligned

    # ---- row tile: as large as the VMEM budget allows, capped by actual need ----
    vmem_budget = _vmem_budget_bytes()
    stream_budget = vmem_budget // 2              # headroom for outputs / MSE slabs
    per_row = 2 * C * itemsize + 2 * 4            # dbl-buffered logits + labels
    max_rows = max(granule, (stream_budget // per_row) // granule * granule)
    need = _round_up(max(pl.cdiv(R, NC), 1), granule)
    TR = max(granule, min(_round_up(tile_rows, granule), max_rows, need))
    SB = TR // 128

    nblocks = pl.cdiv(R, TR)
    steps = max(1, pl.cdiv(nblocks, NC))          # row blocks per core
    R_pad = NC * steps * TR
    R_sub = R_pad // 128

    # ---- lane-dense per-class slabs (C, R_pad/128, 128): one fused pad+transpose
    #      copy (~1x input bytes), rows beyond R are zero and masked in-kernel ----
    logits_cls = jnp.pad(logits, ((0, R_pad - R), (0, 0))).T.reshape(C, R_sub, 128)
    labels_p = jnp.pad(labels.astype(jnp.int32), (0, R_pad - R)).reshape(R_sub, 128)

    # ---- matched-point MSE slab, zero-padded and split across the NC axis ----
    flat_n = N * D
    PRH = max(8, _round_up(pl.cdiv(max(flat_n, 1), NC * 128), 8))
    slab_len = NC * PRH * 128
    pred_slab = jnp.pad(pred_matched.reshape(-1),
                        (0, slab_len - flat_n)).reshape(NC, PRH, 128)
    tgt_slab = jnp.pad(target_matched.reshape(-1),
                       (0, slab_len - flat_n)).reshape(NC, PRH, 128)

    kernel = _make_loss_kernel(C, SB, PRH, TR, R)

    ce_part, mse_part = pl.pallas_call(
        kernel,
        grid=(NC, steps),
        in_specs=[
            pl.BlockSpec((C, SB, 128), lambda c, i: (0, c * steps + i, 0)),   # logits
            pl.BlockSpec((SB, 128), lambda c, i: (c * steps + i, 0)),         # labels
            pl.BlockSpec((1, PRH, 128), lambda c, i: (c, 0, 0)),              # pred slab
            pl.BlockSpec((1, PRH, 128), lambda c, i: (c, 0, 0)),              # tgt slab
        ],
        out_specs=[
            pl.BlockSpec((1, SB, 128), lambda c, i: (c, 0, 0)),   # per-core CE partial
            pl.BlockSpec((1, 8, 128), lambda c, i: (c, 0, 0)),    # per-core MSE partial
        ],
        out_shape=[
            jax.ShapeDtypeStruct((NC, SB, 128), jnp.float32),
            jax.ShapeDtypeStruct((NC, 8, 128), jnp.float32),
        ],
        compiler_params=pltpu.CompilerParams(
            dimension_semantics=("parallel", "arbitrary"),
            vmem_limit_bytes=vmem_budget),
    )(logits_cls, labels_p, pred_slab, tgt_slab)

    # Tiny wrapper-side combine of the per-core partials (a few KB of f32),
    # as recommended for the 2-TensorCore row split.
    loss_ce = jnp.sum(ce_part) / R
    loss_point = jnp.sum(mse_part) / num_bbox      # num_bbox unclamped (matches torch)
    loss = loss_point + 10.0 * loss_ce
    return {'loss_point': loss_point, 'loss_ce': loss_ce, 'loss': loss}


def loss_a_forward(output, target, indices):
    """JAX glue replicating lossA.forward; heavy reductions run in the kernel."""
    pred_point3D = output['pred_point3D']          # (B, Q, D)
    pred_logits = output['pred_logits']            # (B, Q, C), native dtype
    B, Q, C = pred_logits.shape

    # _get_src_permutation_idx (host-side ragged glue)
    batch_idx = jnp.concatenate(
        [jnp.full_like(src, i) for i, (src, _) in enumerate(indices)])
    src_idx = jnp.concatenate([src for src, _ in indices])

    # gather matched predictions / targets (glue)
    pred_matched = pred_point3D[batch_idx, src_idx]                      # (N, D)
    target_matched = jnp.concatenate(
        [jnp.asarray(t['point_gt'], jnp.float32)[tgt]
         for t, (_, tgt) in zip(target, indices)], axis=0)               # (N, D)

    num_bbox = float(sum(len(t['point_gt']) for t in target))

    # target classes: 0 everywhere, 1 at matched (batch, query) positions
    target_class = jnp.zeros((B, Q), jnp.int32).at[batch_idx, src_idx].set(1)
    labels = target_class.reshape(B * Q)                                 # (R,)
    logits_flat = pred_logits.reshape(B * Q, C)                          # (R, C)

    return loss_a_pallas(pred_matched, target_matched, logits_flat,
                         labels, num_bbox)


if __name__ == "__main__":
    key = jax.random.PRNGKey(0)
    B, Q, C, D = 2, 300, 2, 3     # R = 600 rows

    k1, k2, k3, k4 = jax.random.split(key, 4)
    output = {
        'pred_point3D': jax.random.normal(k1, (B, Q, D), jnp.float32),
        'pred_logits': jax.random.normal(k2, (B, Q, C), jnp.float32),
    }
    # ground-truth points: 3 boxes in batch 0, 2 boxes in batch 1
    target = [
        {'point_gt': np.array(jax.random.normal(k3, (3, D)), np.float32)},
        {'point_gt': np.array(jax.random.normal(k4, (2, D)), np.float32)},
    ]
    # (src query indices, tgt gt indices) per batch element
    indices = [
        (jnp.array([1, 45, 123], jnp.int32), jnp.array([0, 2, 1], jnp.int32)),
        (jnp.array([7, 299], jnp.int32), jnp.array([1, 0], jnp.int32)),
    ]

    res = loss_a_forward(output, target, indices)
    jax.block_until_ready(res['loss'])

    # pure-JAX reference check
    batch_idx = jnp.concatenate([jnp.full_like(s, i) for i, (s, _) in enumerate(indices)])
    src_idx = jnp.concatenate([s for s, _ in indices])
    pred_m = output['pred_point3D'][batch_idx, src_idx]
    tgt_m = jnp.concatenate([jnp.asarray(t['point_gt'])[ti]
                             for t, (_, ti) in zip(target, indices)], 0)
    nb = float(sum(len(t['point_gt']) for t in target))
    ref_point = jnp.sum((pred_m - tgt_m) ** 2) / nb
    tc = jnp.zeros((B, Q), jnp.int32).at[batch_idx, src_idx].set(1)
    logp = jax.nn.log_softmax(output['pred_logits'], axis=-1)
    ref_ce = -jnp.mean(jnp.take_along_axis(logp, tc[..., None], axis=-1))
    ref_loss = ref_point + 10.0 * ref_ce

    assert np.allclose(res['loss_point'], ref_point, rtol=1e-5, atol=1e-5)
    assert np.allclose(res['loss_ce'], ref_ce, rtol=1e-5, atol=1e-5)
    assert np.allclose(res['loss'], ref_loss, rtol=1e-5, atol=1e-5)
    print("KERNEL_OK")
</pallas_src>

<mosaic_0001>
module attributes {stable_mosaic.version = 11 : i64} {
  func.func @kernel(%arg0: i32, %arg1: i32, %arg2: memref<2x8x128xf32, #tpu.memory_space<vmem>>, %arg3: memref<8x128xi32, #tpu.memory_space<vmem>>, %arg4: memref<1x8x128xf32, #tpu.memory_space<vmem>>, %arg5: memref<1x8x128xf32, #tpu.memory_space<vmem>>, %arg6: memref<1x8x128xf32, #tpu.memory_space<vmem>>, %arg7: memref<1x8x128xf32, #tpu.memory_space<vmem>>) attributes {dimension_semantics = [#tpu.dimension_semantics<parallel>, #tpu.dimension_semantics<arbitrary>], iteration_bounds = array<i64: 2, 1>, scalar_prefetch = 0 : i64, scratch_operands = 0 : i64, tpu.core_type = #tpu.core_type<tc>, window_params = [{transform_indices = @transform_0, window_bounds = array<i64: 2, 8, 128>}, {transform_indices = @transform_1, window_bounds = array<i64: 8, 128>}, {transform_indices = @transform_2, window_bounds = array<i64: 1, 8, 128>}, {transform_indices = @transform_3, window_bounds = array<i64: 1, 8, 128>}, {transform_indices = @transform_4, window_bounds = array<i64: 1, 8, 128>}, {transform_indices = @transform_5, window_bounds = array<i64: 1, 8, 128>}]} {
    %c1_i32 = arith.constant 1 : i32
    %0 = arith.muli %arg0, %c1_i32 : i32
    %1 = arith.addi %0, %arg1 : i32
    %c0_i32 = arith.constant 0 : i32
    %2 = arith.cmpi eq, %arg1, %c0_i32 : i32
    %3 = arith.extui %2 : i1 to i32
    %c0_i32_0 = arith.constant 0 : i32
    %4 = arith.cmpi ne, %3, %c0_i32_0 : i32
    scf.if %4 {
      %cst_17 = arith.constant 0.000000e+00 : f32
      %46 = vector.broadcast %cst_17 : f32 to vector<1x8x128xf32>
      %c0_18 = arith.constant 0 : index
      %c0_19 = arith.constant 0 : index
      %c0_20 = arith.constant 0 : index
      %47 = vector.load %arg6[%c0_18, %c0_19, %c0_20] : memref<1x8x128xf32, #tpu.memory_space<vmem>>, vector<1x8x128xf32>
      tpu.vector_store %arg6[%c0_18, %c0_19, %c0_20], %46 {strides = array<i32>} : memref<1x8x128xf32, #tpu.memory_space<vmem>>, vector<1x8x128xf32>,
      %c0_21 = arith.constant 0 : index
      %c0_22 = arith.constant 0 : index
      %c0_23 = arith.constant 0 : index
      %48 = vector.load %arg4[%c0_21, %c0_22, %c0_23] : memref<1x8x128xf32, #tpu.memory_space<vmem>>, vector<1x8x128xf32>
      %49 = vector.shape_cast %48 : vector<1x8x128xf32> to vector<8x128xf32>
      %c0_24 = arith.constant 0 : index
      %c0_25 = arith.constant 0 : index
      %c0_26 = arith.constant 0 : index
      %50 = vector.load %arg5[%c0_24, %c0_25, %c0_26] : memref<1x8x128xf32, #tpu.memory_space<vmem>>, vector<1x8x128xf32>
      %51 = vector.shape_cast %50 : vector<1x8x128xf32> to vector<8x128xf32>
      %52 = arith.subf %49, %51 : vector<8x128xf32>
      %53 = arith.mulf %52, %52 : vector<8x128xf32>
      %c0_27 = arith.constant 0 : index
      %c0_28 = arith.constant 0 : index
      %c0_29 = arith.constant 0 : index
      %54 = vector.load %arg7[%c0_27, %c0_28, %c0_29] : memref<1x8x128xf32, #tpu.memory_space<vmem>>, vector<1x8x128xf32>
      %55 = vector.shape_cast %54 : vector<1x8x128xf32> to vector<8x128xf32>
      %56 = vector.shape_cast %53 : vector<8x128xf32> to vector<1x8x128xf32>
      tpu.vector_store %arg7[%c0_27, %c0_28, %c0_29], %56 {strides = array<i32>} : memref<1x8x128xf32, #tpu.memory_space<vmem>>, vector<1x8x128xf32>,
    } else {
    }
    %c0 = arith.constant 0 : index
    %c0_1 = arith.constant 0 : index
    %c0_2 = arith.constant 0 : index
    %5 = vector.load %arg2[%c0, %c0_1, %c0_2] : memref<2x8x128xf32, #tpu.memory_space<vmem>>, vector<1x8x128xf32>
    %6 = vector.shape_cast %5 : vector<1x8x128xf32> to vector<8x128xf32>
    %c1 = arith.constant 1 : index
    %c0_3 = arith.constant 0 : index
    %c0_4 = arith.constant 0 : index
    %7 = vector.load %arg2[%c1, %c0_3, %c0_4] : memref<2x8x128xf32, #tpu.memory_space<vmem>>, vector<1x8x128xf32>
    %8 = vector.shape_cast %7 : vector<1x8x128xf32> to vector<8x128xf32>
    %9 = arith.maximumf %6, %8 : vector<8x128xf32>
    %10 = arith.subf %6, %9 : vector<8x128xf32>
    %11 = math.exp %10 : vector<8x128xf32>
    %12 = arith.subf %8, %9 : vector<8x128xf32>
    %13 = math.exp %12 : vector<8x128xf32>
    %14 = arith.addf %11, %13 : vector<8x128xf32>
    %15 = math.log %14 : vector<8x128xf32>
    %16 = arith.addf %9, %15 : vector<8x128xf32>
    %c0_5 = arith.constant 0 : index
    %c0_6 = arith.constant 0 : index
    %17 = vector.load %arg3[%c0_5, %c0_6] : memref<8x128xi32, #tpu.memory_space<vmem>>, vector<8x128xi32>
    %c0_i32_7 = arith.constant 0 : i32
    %18 = vector.broadcast %c0_i32_7 : i32 to vector<8x128xi32>
    %19 = arith.cmpi eq, %17, %18 : vector<8x128xi32>
    %cst = arith.constant 0.000000e+00 : f32
    %20 = vector.broadcast %cst : f32 to vector<8x128xf32>
    %21 = arith.select %19, %6, %20 : vector<8x128xi1>, vector<8x128xf32>
    %c1_i32_8 = arith.constant 1 : i32
    %22 = vector.broadcast %c1_i32_8 : i32 to vector<8x128xi32>
    %23 = arith.cmpi eq, %17, %22 : vector<8x128xi32>
    %cst_9 = arith.constant 0.000000e+00 : f32
    %24 = vector.broadcast %cst_9 : f32 to vector<8x128xf32>
    %25 = arith.select %23, %8, %24 : vector<8x128xi1>, vector<8x128xf32>
    %26 = arith.addf %21, %25 : vector<8x128xf32>
    %c1024_i32 = arith.constant 1024 : i32
    %27 = arith.muli %1, %c1024_i32 : i32
    %28 = tpu.iota {dimensions = array<i32: 0>} : vector<8x128xi32>
    %c128_i32 = arith.constant 128 : i32
    %29 = vector.broadcast %c128_i32 : i32 to vector<8x128xi32>
    %30 = arith.muli %28, %29 : vector<8x128xi32>
    %31 = vector.broadcast %27 : i32 to vector<8x128xi32>
    %32 = arith.addi %31, %30 : vector<8x128xi32>
    %33 = tpu.iota {dimensions = array<i32: 1>} : vector<8x128xi32>
    %34 = arith.addi %32, %33 : vector<8x128xi32>
    %c600_i32 = arith.constant 600 : i32
    %35 = vector.broadcast %c600_i32 : i32 to vector<8x128xi32>
    %36 = arith.cmpi slt, %34, %35 : vector<8x128xi32>
    %37 = arith.subf %16, %26 : vector<8x128xf32>
    %cst_10 = arith.constant 0.000000e+00 : f32
    %38 = vector.broadcast %cst_10 : f32 to vector<8x128xf32>
    %39 = arith.select %36, %37, %38 : vector<8x128xi1>, vector<8x128xf32>
    %c0_11 = arith.constant 0 : index
    %c0_12 = arith.constant 0 : index
    %c0_13 = arith.constant 0 : index
    %40 = vector.load %arg6[%c0_11, %c0_12, %c0_13] : memref<1x8x128xf32, #tpu.memory_space<vmem>>, vector<1x8x128xf32>
    %41 = vector.shape_cast %40 : vector<1x8x128xf32> to vector<8x128xf32>
    %42 = arith.addf %41, %39 : vector<8x128xf32>
    %c0_14 = arith.constant 0 : index
    %c0_15 = arith.constant 0 : index
    %c0_16 = arith.constant 0 : index
    %43 = vector.load %arg6[%c0_14, %c0_15, %c0_16] : memref<1x8x128xf32, #tpu.memory_space<vmem>>, vector<1x8x128xf32>
    %44 = vector.shape_cast %43 : vector<1x8x128xf32> to vector<8x128xf32>
    %45 = vector.shape_cast %42 : vector<8x128xf32> to vector<1x8x128xf32>
    tpu.vector_store %arg6[%c0_14, %c0_15, %c0_16], %45 {strides = array<i32>} : memref<1x8x128xf32, #tpu.memory_space<vmem>>, vector<1x8x128xf32>,
    return
  }
  func.func @transform_0(%arg0: i32, %arg1: i32) -> (i32, i32, i32) {
    %c1_i32 = arith.constant 1 : i32
    %0 = arith.muli %arg0, %c1_i32 : i32
    %1 = arith.addi %0, %arg1 : i32
    %c0_i32 = arith.constant 0 : i32
    %c0_i32_0 = arith.constant 0 : i32
    %c0_i32_1 = arith.constant 0 : i32
    return %c0_i32, %1, %c0_i32_0 : i32, i32, i32
  }
  func.func @transform_1(%arg0: i32, %arg1: i32) -> (i32, i32) {
    %c1_i32 = arith.constant 1 : i32
    %0 = arith.muli %arg0, %c1_i32 : i32
    %1 = arith.addi %0, %arg1 : i32
    %c0_i32 = arith.constant 0 : i32
    %c0_i32_0 = arith.constant 0 : i32
    return %1, %c0_i32 : i32, i32
  }
  func.func @transform_2(%arg0: i32, %arg1: i32) -> (i32, i32, i32) {
    %c0_i32 = arith.constant 0 : i32
    %c0_i32_0 = arith.constant 0 : i32
    %c0_i32_1 = arith.constant 0 : i32
    return %arg0, %c0_i32, %c0_i32_0 : i32, i32, i32
  }
  func.func @transform_3(%arg0: i32, %arg1: i32) -> (i32, i32, i32) {
    %c0_i32 = arith.constant 0 : i32
    %c0_i32_0 = arith.constant 0 : i32
    %c0_i32_1 = arith.constant 0 : i32
    return %arg0, %c0_i32, %c0_i32_0 : i32, i32, i32
  }
  func.func @transform_4(%arg0: i32, %arg1: i32) -> (i32, i32, i32) {
    %c0_i32 = arith.constant 0 : i32
    %c0_i32_0 = arith.constant 0 : i32
    %c0_i32_1 = arith.constant 0 : i32
    return %arg0, %c0_i32, %c0_i32_0 : i32, i32, i32
  }
  func.func @transform_5(%arg0: i32, %arg1: i32) -> (i32, i32, i32) {
    %c0_i32 = arith.constant 0 : i32
    %c0_i32_0 = arith.constant 0 : i32
    %c0_i32_1 = arith.constant 0 : i32
    return %arg0, %c0_i32, %c0_i32_0 : i32, i32, i32
  }
}

</mosaic_0001>

<llo_original>
// kernel: tpu_custom_call.1
$region0: #{tpu_custom_call.1}
  #allocation0 [shape = 'u32[]', space=smem, size = 0x4, offset = 0x4, fixed_abs, tag = 'smem constant byte address 0x4 - core index']
  #allocation1 [shape = 'u32[144,128]{1,0:T(1,128)}', space=vmem, size = 0x12000, scoped, tag = 'internal scratch']
  %s0 = inlined_call_operand.hbm [shape: f32[2,16,128], index: 0, kind: input, shape index: {}]
  %s1 = inlined_call_operand.hbm [shape: s32[16,128], index: 1, kind: input, shape index: {}]
  %s2 = inlined_call_operand.hbm [shape: f32[2,8,128], index: 2, kind: input, shape index: {}]
  %s3 = inlined_call_operand.hbm [shape: f32[2,8,128], index: 3, kind: input, shape index: {}]
  %s4 = inlined_call_operand.hbm [shape: f32[2,8,128], index: 4, kind: output, shape index: {0}]
  %s5 = inlined_call_operand.hbm [shape: f32[2,8,128], index: 5, kind: output, shape index: {1}]
  %6 = xla_tuple %s4, %s5
  %s7 = sld [smem:[#allocation0]]
  $region77: #{tpu_custom_call.1} parent=0
    _
  %s9 = ssub.s32 1, %s7
  %s10 = scalar_select 0, %s9, %s7
  $region1: #{tpu_custom_call.1} parent=0
    #allocation2 [shape = 'u8[16384]{0}', space=vmem, size = 0x4000, scoped, tag = 'input window, operand 0']
    #allocation3 [shape = 's32[2]{0}', space=sflag, size = 0x8, scoped, tag = 'scoped memory for tpu_custom_call.1']
    #allocation4 [shape = 's32[2]{0}', space=sflag, size = 0x8, scoped, tag = 'scoped memory for tpu_custom_call.1']
    #allocation5 [shape = 'u8[8192]{0}', space=vmem, size = 0x2000, scoped, tag = 'input window, operand 1']
    #allocation6 [shape = 's32[2]{0}', space=sflag, size = 0x8, scoped, tag = 'scoped memory for tpu_custom_call.1']
    #allocation7 [shape = 'u8[8192]{0}', space=vmem, size = 0x2000, scoped, tag = 'input window, operand 2']
    #allocation8 [shape = 'u8[8192]{0}', space=vmem, size = 0x2000, scoped, tag = 'input window, operand 3']
    #allocation9 [shape = 's32[2]{0}', space=sflag, size = 0x8, scoped, tag = 'scoped memory for tpu_custom_call.1']
    #allocation10 [shape = 'u8[8192]{0}', space=vmem, size = 0x2000, scoped, tag = 'output window, operand 0']
    #allocation11 [shape = 'u8[8192]{0}', space=vmem, size = 0x2000, scoped, tag = 'output window, operand 1']
    #allocation12 [shape = 's32[2]{0}', space=sflag, size = 0x8, scoped, tag = 'scoped memory for tpu_custom_call.1']
    %11 = vsyncpa [#allocation3], 0
    %s12 = scalar_lea.sflag [#allocation3], 1
    %13 = vsyncpa %s12, 0
    %14 = vsyncpa [#allocation6], 0
    %s15 = scalar_lea.sflag [#allocation6], 1
    %16 = vsyncpa %s15, 0
    %17 = vsyncpa [#allocation9], 0
    %s18 = scalar_lea.sflag [#allocation9], 1
    %19 = vsyncpa %s18, 0
    %20 = vsyncpa [#allocation4], 0
    %s21 = scalar_lea.sflag [#allocation4], 1
    %22 = vsyncpa %s21, 0
    %23 = vsyncpa [#allocation12], 0
    %s24 = scalar_lea.sflag [#allocation12], 1
    %25 = vsyncpa %s24, 0
    loop: start=0, step=1, limit=4
    $region2: #{tpu_custom_call.1} parent=1 // loop_pre_header
      _
    $region3: #{tpu_custom_call.1} parent=1 // loop_header
      %s27 = sphi 0, %s31
      %p28 = scmp.ge.s32.totalorder %s27, 4
      %s34 = sphi 0, %s46
      %s35 = sphi 0, %s42
      %s36 = sphi 0, %s34
      %s37 = sphi 0, %s35
      %s38 = sphi 0, %s36
      %s39 = sphi 0, %s37
      %s51 = sphi 0, %s53
      %s54 = sphi 0, %s51
      %s55 = sphi 0, %s54
      %s71 = sphi 0, %s55
      %s79 = sphi 0, %s81
      %s82 = sphi 0, %s79
      %s83 = sphi 0, %s82
      %s99 = sphi 0, %s83
      %s105 = sphi 0, %s107
      %s108 = sphi 0, %s105
      %s109 = sphi 0, %s108
      %s125 = sphi 0, %s109
      %s131 = sphi 0, %s133
      %s134 = sphi 0, %s131
      %s135 = sphi 0, %s134
      %s151 = sphi 0, %s135
      %s157 = sphi 0, %s159
      %s160 = sphi 0, %s157
      %s161 = sphi 0, %s160
      %s177 = sphi 0, %s161
      %s183 = sphi 0, %s185
      %s186 = sphi 0, %s183
      %s187 = sphi 0, %s186
      %s203 = sphi 0, %s187
    $region4: #{tpu_custom_call.1} parent=1 // loop_header_branch
      %30 = sbr.rel (%p28) target = $region8
    $region5: #{tpu_custom_call.1} parent=1 // loop_body
      %s32 = ssub.s32 %s27, 1
      %s33 = ssub.s32 %s27, 2
      %s40 = sadd.s32 1, %s35
      %p41 = scmp.ge.s32.totalorder %s40, 1
      %s42 = scalar_select %p41, 0, %s40
      %s43 = sadd.s32 1, %s34
      %s44 = scalar_select %p41, %s43, %s34
      %p45 = scmp.ge.s32.totalorder %s44, 2
      %s46 = scalar_select %p45, 0, %s44
      %s47 = sadd.s32 %s34, %s35
      %s48 = sadd.s32 %s46, %s42
      %s49 = ssub.s32 %s47, %s48
      %p50 = scmp.eq.s32.totalorder %s49, 0
      %s52 = sadd.s32 %s51, 1
      %s53 = scalar_select %p50, %s51, %s52
      %p56 = pneg %p50
      %p57 = scmp.eq.s32.totalorder %s27, 1
      %p58 = por %p56, %p57
      %p59 = scmp.ne.s32.totalorder %s51, %s54
      %p60 = scmp.eq.s32.totalorder %s27, 0
      %p61 = por %p59, %p60
      %p62 = scmp.ne.s32.totalorder %s51, %s54
      %p63 = scmp.eq.s32.totalorder %s32, 1
      %p64 = por %p62, %p63
      %p65 = scmp.ne.s32.totalorder %s54, %s55
      %p66 = scmp.eq.s32.totalorder %s32, 0
      %p67 = por %p65, %p66
      %p68 = scmp.ne.s32.totalorder %s54, %s55
      %p69 = scmp.eq.s32.totalorder %s33, 1
      %p70 = por %p68, %p69
      %p72 = scmp.ne.s32.totalorder %s55, %s71
      %p73 = scmp.eq.s32.totalorder %s33, 0
      %p74 = por %p72, %p73
      %s75 = sadd.s32 %s34, %s35
      %s76 = sadd.s32 %s46, %s42
      %s77 = ssub.s32 %s75, %s76
      %p78 = scmp.eq.s32.totalorder %s77, 0
      %s80 = sadd.s32 %s79, 1
      %s81 = scalar_select %p78, %s79, %s80
      %p84 = pneg %p78
      %p85 = scmp.eq.s32.totalorder %s27, 1
      %p86 = por %p84, %p85
      %p87 = scmp.ne.s32.totalorder %s79, %s82
      %p88 = scmp.eq.s32.totalorder %s27, 0
      %p89 = por %p87, %p88
      %p90 = scmp.ne.s32.totalorder %s79, %s82
      %p91 = scmp.eq.s32.totalorder %s32, 1
      %p92 = por %p90, %p91
      %p93 = scmp.ne.s32.totalorder %s82, %s83
      %p94 = scmp.eq.s32.totalorder %s32, 0
      %p95 = por %p93, %p94
      %p96 = scmp.ne.s32.totalorder %s82, %s83
      %p97 = scmp.eq.s32.totalorder %s33, 1
      %p98 = por %p96, %p97
      %p100 = scmp.ne.s32.totalorder %s83, %s99
      %p101 = scmp.eq.s32.totalorder %s33, 0
      %p102 = por %p100, %p101
      %s103 = ssub.s32 %s34, %s46
      %p104 = scmp.eq.s32.totalorder %s103, 0
      %s106 = sadd.s32 %s105, 1
      %s107 = scalar_select %p104, %s105, %s106
      %p110 = pneg %p104
      %p111 = scmp.eq.s32.totalorder %s27, 1
      %p112 = por %p110, %p111
      %p113 = scmp.ne.s32.totalorder %s105, %s108
      %p114 = scmp.eq.s32.totalorder %s27, 0
      %p115 = por %p113, %p114
      %p116 = scmp.ne.s32.totalorder %s105, %s108
      %p117 = scmp.eq.s32.totalorder %s32, 1
      %p118 = por %p116, %p117
      %p119 = scmp.ne.s32.totalorder %s108, %s109
      %p120 = scmp.eq.s32.totalorder %s32, 0
      %p121 = por %p119, %p120
      %p122 = scmp.ne.s32.totalorder %s108, %s109
      %p123 = scmp.eq.s32.totalorder %s33, 1
      %p124 = por %p122, %p123
      %p126 = scmp.ne.s32.totalorder %s109, %s125
      %p127 = scmp.eq.s32.totalorder %s33, 0
      %p128 = por %p126, %p127
      %s129 = ssub.s32 %s34, %s46
      %p130 = scmp.eq.s32.totalorder %s129, 0
      %s132 = sadd.s32 %s131, 1
      %s133 = scalar_select %p130, %s131, %s132
      %p136 = pneg %p130
      %p137 = scmp.eq.s32.totalorder %s27, 1
      %p138 = por %p136, %p137
      %p139 = scmp.ne.s32.totalorder %s131, %s134
      %p140 = scmp.eq.s32.totalorder %s27, 0
      %p141 = por %p139, %p140
      %p142 = scmp.ne.s32.totalorder %s131, %s134
      %p143 = scmp.eq.s32.totalorder %s32, 1
      %p144 = por %p142, %p143
      %p145 = scmp.ne.s32.totalorder %s134, %s135
      %p146 = scmp.eq.s32.totalorder %s32, 0
      %p147 = por %p145, %p146
      %p148 = scmp.ne.s32.totalorder %s134, %s135
      %p149 = scmp.eq.s32.totalorder %s33, 1
      %p150 = por %p148, %p149
      %p152 = scmp.ne.s32.totalorder %s135, %s151
      %p153 = scmp.eq.s32.totalorder %s33, 0
      %p154 = por %p152, %p153
      %s155 = ssub.s32 %s34, %s46
      %p156 = scmp.eq.s32.totalorder %s155, 0
      %s158 = sadd.s32 %s157, 1
      %s159 = scalar_select %p156, %s157, %s158
      %p162 = pneg %p156
      %p163 = scmp.eq.s32.totalorder %s27, 1
      %p164 = por %p162, %p163
      %p165 = scmp.ne.s32.totalorder %s157, %s160
      %p166 = scmp.eq.s32.totalorder %s27, 0
      %p167 = por %p165, %p166
      %p168 = scmp.ne.s32.totalorder %s157, %s160
      %p169 = scmp.eq.s32.totalorder %s32, 1
      %p170 = por %p168, %p169
      %p171 = scmp.ne.s32.totalorder %s160, %s161
      %p172 = scmp.eq.s32.totalorder %s32, 0
      %p173 = por %p171, %p172
      %p174 = scmp.ne.s32.totalorder %s160, %s161
      %p175 = scmp.eq.s32.totalorder %s33, 1
      %p176 = por %p174, %p175
      %p178 = scmp.ne.s32.totalorder %s161, %s177
      %p179 = scmp.eq.s32.totalorder %s33, 0
      %p180 = por %p178, %p179
      %s181 = ssub.s32 %s34, %s46
      %p182 = scmp.eq.s32.totalorder %s181, 0
      %s184 = sadd.s32 %s183, 1
      %s185 = scalar_select %p182, %s183, %s184
      %p188 = pneg %p182
      %p189 = scmp.eq.s32.totalorder %s27, 1
      %p190 = por %p188, %p189
      %p191 = scmp.ne.s32.totalorder %s183, %s186
      %p192 = scmp.eq.s32.totalorder %s27, 0
      %p193 = por %p191, %p192
      %p194 = scmp.ne.s32.totalorder %s183, %s186
      %p195 = scmp.eq.s32.totalorder %s32, 1
      %p196 = por %p194, %p195
      %p197 = scmp.ne.s32.totalorder %s186, %s187
      %p198 = scmp.eq.s32.totalorder %s32, 0
      %p199 = por %p197, %p198
      %p200 = scmp.ne.s32.totalorder %s186, %s187
      %p201 = scmp.eq.s32.totalorder %s33, 1
      %p202 = por %p200, %p201
      %p204 = scmp.ne.s32.totalorder %s187, %s203
      %p205 = scmp.eq.s32.totalorder %s33, 0
      %p206 = por %p204, %p205
      %p207 = scmp.le.s32.totalorder 1, %s27
      %p208 = scmp.lt.s32.totalorder %s27, 3
      %p209 = pnand %p207, %p208
      %p210 = pneg %p209
      // Predicated region
      $region9: #{tpu_custom_call.1} parent=5 // pred_check
        _
      $region10: #{tpu_custom_call.1} parent=5 // pred_check_branch
        %212 = sbr.rel (%p209) target = $region12
      $region11: #{tpu_custom_call.1} parent=5 // pred_region
        %s213 = ssub.s32 %s27, 1
      $region12: #{tpu_custom_call.1} parent=5 // pred_fallthru
        _
      %p214 = scmp.lt.s32.totalorder %s27, 2
      // Predicated region
      $region13: #{tpu_custom_call.1} parent=5 // pred_check
        %p215 = pneg %p214
      $region14: #{tpu_custom_call.1} parent=5 // pred_check_branch
        %217 = sbr.rel (%p215) target = $region16
      $region15: #{tpu_custom_call.1} parent=5 // pred_region
        // Predicated region
        $region17: #{tpu_custom_call.1} parent=15 // pred_check
          %p218 = pneg %p61
        $region18: #{tpu_custom_call.1} parent=15 // pred_check_branch
          %220 = sbr.rel (%p218) target = $region20
        $region19: #{tpu_custom_call.1} parent=15 // pred_region
          %s221 = sand.u32 %s51, 1
          %s222 = scalar_lea.sflag [#allocation3], %s221
          %s223 = sand.u32 %s51, 1
          %s224 = smul.addr %s223, 16
          %s225 = scalar_lea.vmem [#allocation2], %s224
          %s226 = sadd.s32 %s34, %s35
          %s228 = ssub.s32 256, 256
          %229 = vsyncadd %s222, %s228
          %s230 = smul.addr %s226, 128
          %s231 = scalar_lea.hbm %s0, %s230
          %s232 = sshll.u32 %s225, 4
          %s233 = int_to_ptr.vmem [resolvable:$true] %s232
          %238 = dma.hbm_to_vmem [thread:$0]  %s231, 256, %s233, %s222, 256, 128, 8
        $region20: #{tpu_custom_call.1} parent=15 // pred_fallthru
          _
        // Predicated region
        $region21: #{tpu_custom_call.1} parent=15 // pred_check
          %p239 = pneg %p89
        $region22: #{tpu_custom_call.1} parent=15 // pred_check_branch
          %241 = sbr.rel (%p239) target = $region24
        $region23: #{tpu_custom_call.1} parent=15 // pred_region
          %s242 = sand.u32 %s27, 1
          %s243 = scalar_lea.sflag [#allocation6], %s242
          %s244 = sand.u32 %s79, 1
          %s245 = smul.addr %s244, 8
          %s246 = scalar_lea.vmem [#allocation5], %s245
          %s247 = sadd.s32 %s34, %s35
          %s249 = ssub.s32 128, 128
          %250 = vsyncadd %s243, %s249
          %s251 = smul.addr %s247, 128
          %s252 = scalar_lea.hbm %s1, %s251
          %s254 = sshll.u32 %s246, 4
          %s255 = int_to_ptr.vmem [resolvable:$true] %s254
          %257 = dma.hbm_to_vmem [thread:$0]  %s252, 128, %s255, %s243
        $region24: #{tpu_custom_call.1} parent=15 // pred_fallthru
          _
        // Predicated region
        $region25: #{tpu_custom_call.1} parent=15 // pred_check
          %p258 = pneg %p115
        $region26: #{tpu_custom_call.1} parent=15 // pred_check_branch
          %260 = sbr.rel (%p258) target = $region28
        $region27: #{tpu_custom_call.1} parent=15 // pred_region
          %s261 = sand.u32 %s27, 1
          %s262 = scalar_lea.sflag [#allocation6], %s261
          %s263 = sand.u32 %s105, 1
          %s264 = smul.addr %s263, 8
          %s265 = scalar_lea.vmem [#allocation7], %s264
          %s267 = ssub.s32 128, 128
          %268 = vsyncadd %s262, %s267
          %s269 = smul.addr %s34, 128
          %s270 = scalar_lea.hbm %s2, %s269
          %s272 = sshll.u32 %s265, 4
          %s273 = int_to_ptr.vmem [resolvable:$true] %s272
          %275 = dma.hbm_to_vmem [thread:$0]  %s270, 128, %s273, %s262
        $region28: #{tpu_custom_call.1} parent=15 // pred_fallthru
          _
        // Predicated region
        $region29: #{tpu_custom_call.1} parent=15 // pred_check
          %p276 = pneg %p141
        $region30: #{tpu_custom_call.1} parent=15 // pred_check_branch
          %278 = sbr.rel (%p276) target = $region32
        $region31: #{tpu_custom_call.1} parent=15 // pred_region
          %s279 = sand.u32 %s131, 1
          %s280 = scalar_lea.sflag [#allocation9], %s279
          %s281 = sand.u32 %s131, 1
          %s282 = smul.addr %s281, 8
          %s283 = scalar_lea.vmem [#allocation8], %s282
          %s285 = ssub.s32 128, 128
          %286 = vsyncadd %s280, %s285
          %s287 = smul.addr %s34, 128
          %s288 = scalar_lea.hbm %s3, %s287
          %s290 = sshll.u32 %s283, 4
          %s291 = int_to_ptr.vmem [resolvable:$true] %s290
          %293 = dma.hbm_to_vmem [thread:$0]  %s288, 128, %s291, %s280
        $region32: #{tpu_custom_call.1} parent=15 // pred_fallthru
          _
      $region16: #{tpu_custom_call.1} parent=5 // pred_fallthru
        _
      %p294 = scmp.le.s32.totalorder 1, %s27
      %p295 = scmp.lt.s32.totalorder %s27, 3
      %p296 = pnand %p294, %p295
      %p297 = pneg %p296
      // Predicated region
      $region33: #{tpu_custom_call.1} parent=5 // pred_check
        _
      $region34: #{tpu_custom_call.1} parent=5 // pred_check_branch
        %299 = sbr.rel (%p296) target = $region36
      $region35: #{tpu_custom_call.1} parent=5 // pred_region
        %s300 = ssub.s32 %s27, 1
        %s301 = sand.u32 %s54, 1
        %s302 = scalar_lea.sflag [#allocation3], %s301
        %s303 = sand.u32 %s54, 1
        %s304 = smul.addr %s303, 16
        %s305 = scalar_lea.vmem [#allocation2], %s304
        // Predicated region
        $region37: #{tpu_custom_call.1} parent=35 // pred_check
          %p306 = pneg %p67
        $region38: #{tpu_custom_call.1} parent=35 // pred_check_branch
          %308 = sbr.rel (%p306) target = $region40
        $region39: #{tpu_custom_call.1} parent=35 // pred_region
          %309 = dma.done %s302, 256
        $region40: #{tpu_custom_call.1} parent=35 // pred_fallthru
          _
        %s310 = sand.u32 %s32, 1
        %s311 = scalar_lea.sflag [#allocation6], %s310
        %s312 = sand.u32 %s82, 1
        %s313 = smul.addr %s312, 8
        %s314 = scalar_lea.vmem [#allocation5], %s313
        // Predicated region
        $region41: #{tpu_custom_call.1} parent=35 // pred_check
          %p315 = pneg %p95
        $region42: #{tpu_custom_call.1} parent=35 // pred_check_branch
          %317 = sbr.rel (%p315) target = $region44
        $region43: #{tpu_custom_call.1} parent=35 // pred_region
          %318 = dma.done %s311, 128
        $region44: #{tpu_custom_call.1} parent=35 // pred_fallthru
          _
        %s319 = sand.u32 %s32, 1
        %s320 = scalar_lea.sflag [#allocation6], %s319
        %s321 = sand.u32 %s108, 1
        %s322 = smul.addr %s321, 8
        %s323 = scalar_lea.vmem [#allocation7], %s322
        // Predicated region
        $region45: #{tpu_custom_call.1} parent=35 // pred_check
          %p324 = pneg %p121
        $region46: #{tpu_custom_call.1} parent=35 // pred_check_branch
          %326 = sbr.rel (%p324) target = $region48
        $region47: #{tpu_custom_call.1} parent=35 // pred_region
          %327 = dma.done %s320, 128
        $region48: #{tpu_custom_call.1} parent=35 // pred_fallthru
          _
        %s328 = sand.u32 %s134, 1
        %s329 = scalar_lea.sflag [#allocation9], %s328
        %s330 = sand.u32 %s134, 1
        %s331 = smul.addr %s330, 8
        %s332 = scalar_lea.vmem [#allocation8], %s331
        // Predicated region
        $region49: #{tpu_custom_call.1} parent=35 // pred_check
          %p333 = pneg %p147
        $region50: #{tpu_custom_call.1} parent=35 // pred_check_branch
          %335 = sbr.rel (%p333) target = $region52
        $region51: #{tpu_custom_call.1} parent=35 // pred_region
          %336 = dma.done %s329, 128
        $region52: #{tpu_custom_call.1} parent=35 // pred_fallthru
          _
        %s337 = sand.u32 %s54, 1
        %s338 = scalar_lea.sflag [#allocation3], %s337
        %s339 = sand.u32 %s54, 1
        %s340 = smul.addr %s339, 16
        %s341 = scalar_lea.vmem [#allocation2], %s340
        %p342 = pneg %p67
        %p343 = pneg %p64
        %s344 = sand.u32 %s32, 1
        %s345 = scalar_lea.sflag [#allocation6], %s344
        %s346 = sand.u32 %s82, 1
        %s347 = smul.addr %s346, 8
        %s348 = scalar_lea.vmem [#allocation5], %s347
        %p349 = pneg %p95
        %p350 = pneg %p92
        %s351 = sand.u32 %s32, 1
        %s352 = scalar_lea.sflag [#allocation6], %s351
        %s353 = sand.u32 %s108, 1
        %s354 = smul.addr %s353, 8
        %s355 = scalar_lea.vmem [#allocation7], %s354
        %p356 = pneg %p121
        %p357 = pneg %p118
        %s358 = sand.u32 %s134, 1
        %s359 = scalar_lea.sflag [#allocation9], %s358
        %s360 = sand.u32 %s134, 1
        %s361 = smul.addr %s360, 8
        %s362 = scalar_lea.vmem [#allocation8], %s361
        %p363 = pneg %p147
        %p364 = pneg %p144
        %p365 = pneg %p173
        %p366 = pneg %p170
        %s367 = sand.u32 %s160, 1
        %s368 = scalar_lea.sflag [#allocation4], %s367
        %s369 = sand.u32 %s160, 1
        %s370 = smul.addr %s369, 8
        %s371 = scalar_lea.vmem [#allocation10], %s370
        %p372 = pneg %p199
        %p373 = pneg %p196
        %s374 = sand.u32 %s186, 1
        %s375 = scalar_lea.sflag [#allocation12], %s374
        %s376 = sand.u32 %s186, 1
        %s377 = smul.addr %s376, 8
        %s378 = scalar_lea.vmem [#allocation11], %s377
        %s379 = sadd.s32 %s36, %s37
        %s380 = sadd.s32 %s36, %s37
        %s381 = sadd.s32 %s36, %s37
        %p382 = scmp.eq.s32.totalorder %s37, 0
        // Predicated region
        $region53: #{tpu_custom_call.1} parent=35 // pred_check
          %p383 = pneg %p382
        $region54: #{tpu_custom_call.1} parent=35 // pred_check_branch
          %385 = sbr.rel (%p383) target = $region56
        $region55: #{tpu_custom_call.1} parent=35 // pred_region
          %386 = vst [vmem:[%s371] sm:$0xff] 0.0
          %v387 = vld [vmem:[%s323] sm:$0xff]
          %v388 = vld [vmem:[%s332] sm:$0xff]
          %v389 = vsub.f32 %v387, %v388
          %v390 = vmul.f32 %v389, %v389
          %391 = vst [vmem:[%s378] sm:$0xff] %v390
        $region56: #{tpu_custom_call.1} parent=35 // pred_fallthru
          _
        %v392 = vld [vmem:[%s305] sm:$0xff]
        %s393 = scalar_lea.vmem %s305, 8 [#allocation2]
        %v394 = vld [vmem:[%s393] sm:$0xff]
        %v395 = vmax.f32 %v392, %v394
        %v396 = vsub.f32 %v392, %v395
        %v397 = vmul.f32 %v396, 1.442695
        %v398 = vpow.pop %v397
        %v399 = vsub.f32 %v394, %v395
        %v400 = vmul.f32 %v399, 1.442695
        %v401 = vpow.pop %v400
        %v402 = vadd.f32 %v398, %v401
        %v403 = vlog2.pop %v402
        %v404 = vmul.f32 %v403, 0.6931472
        %v405 = vadd.f32 %v395, %v404
        %v406 = vld [vmem:[%s314] sm:$0xff]
        %vm407 = vcmp.eq.s32.totalorder %v406, 0
        %v408 = vsel %vm407, %v392, 0.0
        %vm409 = vcmp.eq.s32.totalorder %v406, 1
        %v410 = vsel %vm409, %v394, 0.0
        %v411 = vadd.f32 %v408, %v410
        %s412 = smul.u32 %s381, 1024
        %v413 = vlaneseq
        %v414 = vshrl.u32 %v413, 7
        %v415 = vmul.u32 %v414, 128
        %v416 = vstv %s412
        %v417 = vadd.s32 %v416, %v415
        %v418 = vlaneseq
        %v419 = vand.u32 %v418, 127
        %v420 = vadd.s32 %v417, %v419
        %vm421 = vcmp.lt.s32.totalorder %v420, 600
        %v422 = vsub.f32 %v405, %v411
        %v423 = vsel %vm421, %v422, 0.0
        %v424 = vld [vmem:[%s371] sm:$0xff]
        %v425 = vadd.f32 %v424, %v423
        %426 = vst [vmem:[%s371] sm:$0xff] %v425
        %s427 = sand.u32 %s160, 1
        %s428 = scalar_lea.sflag [#allocation4], %s427
        %s429 = sand.u32 %s160, 1
        %s430 = smul.addr %s429, 8
        %s431 = scalar_lea.vmem [#allocation10], %s430
        %s432 = sand.u32 %s186, 1
        %s433 = scalar_lea.sflag [#allocation12], %s432
        %s434 = sand.u32 %s186, 1
        %s435 = smul.addr %s434, 8
        %s436 = scalar_lea.vmem [#allocation11], %s435
        // Predicated region
        $region57: #{tpu_custom_call.1} parent=35 // pred_check
          %p437 = pneg %p170
        $region58: #{tpu_custom_call.1} parent=35 // pred_check_branch
          %439 = sbr.rel (%p437) target = $region60
        $region59: #{tpu_custom_call.1} parent=35 // pred_region
          %s441 = ssub.s32 128, 128
          %442 = vsyncadd %s428, %s441
          %s443 = smul.addr %s36, 128
          %s444 = scalar_lea.hbm %s4, %s443
          %s446 = sshll.u32 %s431, 4
          %s447 = int_to_ptr.vmem [resolvable:$true] %s446
          %449 = dma.vmem_to_hbm [thread:$0]  %s447, 128, %s444, %s428
        $region60: #{tpu_custom_call.1} parent=35 // pred_fallthru
          _
        // Predicated region
        $region61: #{tpu_custom_call.1} parent=35 // pred_check
          %p450 = pneg %p196
        $region62: #{tpu_custom_call.1} parent=35 // pred_check_branch
          %452 = sbr.rel (%p450) target = $region64
        $region63: #{tpu_custom_call.1} parent=35 // pred_region
          %s454 = ssub.s32 128, 128
          %455 = vsyncadd %s433, %s454
          %s456 = smul.addr %s36, 128
          %s457 = scalar_lea.hbm %s5, %s456
          %s459 = sshll.u32 %s436, 4
          %s460 = int_to_ptr.vmem [resolvable:$true] %s459
          %462 = dma.vmem_to_hbm [thread:$0]  %s460, 128, %s457, %s433
        $region64: #{tpu_custom_call.1} parent=35 // pred_fallthru
          _
      $region36: #{tpu_custom_call.1} parent=5 // pred_fallthru
        _
      %p463 = scmp.le.s32.totalorder 2, %s27
      // Predicated region
      $region65: #{tpu_custom_call.1} parent=5 // pred_check
        %p464 = pneg %p463
      $region66: #{tpu_custom_call.1} parent=5 // pred_check_branch
        %466 = sbr.rel (%p464) target = $region68
      $region67: #{tpu_custom_call.1} parent=5 // pred_region
        %s467 = ssub.s32 %s27, 2
        // Predicated region
        $region69: #{tpu_custom_call.1} parent=67 // pred_check
          %p468 = pneg %p176
        $region70: #{tpu_custom_call.1} parent=67 // pred_check_branch
          %470 = sbr.rel (%p468) target = $region72
        $region71: #{tpu_custom_call.1} parent=67 // pred_region
          %s471 = sand.u32 %s161, 1
          %s472 = scalar_lea.sflag [#allocation4], %s471
          %s473 = sand.u32 %s161, 1
          %s474 = smul.addr %s473, 8
          %s475 = scalar_lea.vmem [#allocation10], %s474
          %476 = dma.done %s472, 128
        $region72: #{tpu_custom_call.1} parent=67 // pred_fallthru
          _
        // Predicated region
        $region73: #{tpu_custom_call.1} parent=67 // pred_check
          %p477 = pneg %p202
        $region74: #{tpu_custom_call.1} parent=67 // pred_check_branch
          %479 = sbr.rel (%p477) target = $region76
        $region75: #{tpu_custom_call.1} parent=67 // pred_region
          %s480 = sand.u32 %s187, 1
          %s481 = scalar_lea.sflag [#allocation12], %s480
          %s482 = sand.u32 %s187, 1
          %s483 = smul.addr %s482, 8
          %s484 = scalar_lea.vmem [#allocation11], %s483
          %485 = dma.done %s481, 128
        $region76: #{tpu_custom_call.1} parent=67 // pred_fallthru
          _
      $region68: #{tpu_custom_call.1} parent=5 // pred_fallthru
        _
    $region6: #{tpu_custom_call.1} parent=1 // loop_footer
      %s31 = sadd.s32 1, %s27
    $region7: #{tpu_custom_call.1} parent=1 // loop_footer_branch
      %26 = sbr.rel target = $region3
    $region8: #{tpu_custom_call.1} parent=1 // loop_exit
      _
    %486 = vsyncpa [#allocation3], 1
    %s487 = scalar_lea.sflag [#allocation3], 1
    %488 = vsyncpa %s487, 1
    %489 = vsyncpa [#allocation6], 1
    %s490 = scalar_lea.sflag [#allocation6], 1
    %491 = vsyncpa %s490, 1
    %492 = vsyncpa [#allocation9], 1
    %s493 = scalar_lea.sflag [#allocation9], 1
    %494 = vsyncpa %s493, 1
    %495 = vsyncpa [#allocation4], 1
    %s496 = scalar_lea.sflag [#allocation4], 1
    %497 = vsyncpa %s496, 1
    %498 = vsyncpa [#allocation12], 1
    %s499 = scalar_lea.sflag [#allocation12], 1
    %500 = vsyncpa %s499, 1

</llo_original>
